<compile_context>
chip_gen: v5e
topology: v5e:2x2
jax: 0.10.0
libtpu: 0.0.40
codegen_flags: <defaults>
</compile_context>

<pallas_src>
import functools

import jax
import jax.numpy as jnp
from jax.experimental import pallas as pl
from jax.experimental.pallas import tpu as pltpu


def _texcycle_kernel(flow_ref, prob_ref, aggr_ref, loss_ref, avg_ref, *,
                     nb, inv_nrr, inv_denom):
    # flow_ref: (B, nf, L) f32, L = nr*nr*2 (natural interleaved layout)
    # prob_ref: (B, nf, 2) f32
    # aggr_ref: (B, 1, n_pix) i32 (lane-dense)
    # loss_ref: (8, 128) f32 — this tile's partial loss, broadcast (lane-dense store)
    # avg_ref : (nf, 2) f32 — avg_flow of this tile's first batch row
    B, nf, L = flow_ref.shape
    n_pix = aggr_ref.shape[-1]
    tile = pl.program_id(0)

    # ---- loop-invariant constants, hoisted out of the per-batch loop ----
    # w[l, c] = 1/nrr if flow lane l carries component c (l % 2 == c) else 0, so
    # flow_row @ w == per-face mean over the nr*nr grid — done on the idle MXU.
    lane = jax.lax.broadcasted_iota(jnp.int32, (L, 2), 0)
    comp = jax.lax.broadcasted_iota(jnp.int32, (L, 2), 1)
    w = jnp.where((lane % 2) == comp, jnp.float32(inv_nrr), jnp.float32(0.0))
    # face-id iota for the visibility mask (faces on sublanes, pixels on lanes)
    fid = jax.lax.broadcasted_iota(jnp.int32, (nf, n_pix), 0)

    acc = jnp.zeros((nf, 2), jnp.float32)
    for b in range(B):
        # per-face mean of the texture-flow grid (MXU matmul, VPU stays free)
        avg_b = jnp.dot(flow_ref[b], w, preferred_element_type=jnp.float32)  # (nf, 2)
        if b == 0:
            # only this tile's first batch row is ever consumed (avg_flow[0])
            avg_ref[...] = avg_b

        # visibility mask; duplicate face ids handled naturally by the OR-reduce
        vis = jnp.any(fid == aggr_ref[b], axis=1, keepdims=True)             # (nf, 1)
        diff = jnp.where(vis, avg_b - prob_ref[b], jnp.float32(0.0))         # (nf, 2)
        d2 = diff * diff
        if nb % B != 0:
            # last tile may contain padded (garbage) rows -> gate by global index
            d2 = jnp.where(tile * B + b < nb, d2, jnp.float32(0.0))
        acc = acc + d2

    partial = jnp.sum(acc) * inv_denom
    loss_ref[...] = jnp.zeros(loss_ref.shape, jnp.float32) + partial


def tex_cycle(flow, prob, aggr_info, *, b_tile=4):
    """flow: (nb, nf, nr, nr, 2) f32; prob: (nb, nf, 2) f32; aggr_info: (nb, n_pix) int."""
    nb, nf, nr, _, _ = flow.shape
    nrr = nr * nr
    L = nrr * 2
    n_pix = aggr_info.shape[1]

    B = min(nb, b_tile)
    n_tiles = pl.cdiv(nb, B)

    # free views only — no HBM relayout of flow/prob
    flow_k = flow.reshape(nb, nf, L)
    prob_k = prob
    aggr_k = aggr_info.astype(jnp.int32).reshape(nb, 1, n_pix)   # lane-dense

    inv_denom = 1.0 / float(nb * nf * 2)
    kernel = functools.partial(_texcycle_kernel, nb=nb, inv_nrr=1.0 / nrr,
                               inv_denom=inv_denom)

    grid_spec = pltpu.PrefetchScalarGridSpec(
        num_scalar_prefetch=0,
        grid=(n_tiles,),
        in_specs=[
            pl.BlockSpec((B, nf, L), lambda i: (i, 0, 0)),
            pl.BlockSpec((B, nf, 2), lambda i: (i, 0, 0)),
            pl.BlockSpec((B, 1, n_pix), lambda i: (i, 0, 0)),
        ],
        out_specs=[
            pl.BlockSpec((None, 8, 128), lambda i: (i, 0, 0)),   # per-tile loss partial
            pl.BlockSpec((None, nf, 2), lambda i: (i, 0, 0)),    # per-tile avg (row 0 only)
        ],
    )

    bytes_accessed = 4 * (flow_k.size + prob_k.size + aggr_k.size
                          + n_tiles * (8 * 128 + nf * 2))
    flops = nb * nf * (4 * L + n_pix + 8)
    cost = pl.CostEstimate(flops=flops, transcendentals=0,
                           bytes_accessed=bytes_accessed)

    partials, avg_tiles = pl.pallas_call(
        kernel,
        grid_spec=grid_spec,
        out_shape=(
            jax.ShapeDtypeStruct((n_tiles, 8, 128), jnp.float32),
            jax.ShapeDtypeStruct((n_tiles, nf, 2), jnp.float32),
        ),
        compiler_params=pltpu.CompilerParams(
            dimension_semantics=("parallel",),
        ),
        cost_estimate=cost,
    )(flow_k, prob_k, aggr_k)

    loss = jnp.sum(partials[:, 0, 0])
    avg_flow0 = avg_tiles[0]                 # (nf, 2): avg_flow for batch 0
    return loss, avg_flow0[0:10, :]


def tex_cycle_ref(flow, prob, aggr_info):
    """Pure-JAX reference mirroring the PyTorch forward."""
    nb, nf = flow.shape[0], flow.shape[1]
    flow_grid = flow.reshape(nb, nf, -1, 2)
    avg_flow = jnp.mean(flow_grid, axis=2)
    mask = jnp.zeros_like(avg_flow)
    for b in range(nb):
        mask = mask.at[b, aggr_info[b], :].set(1.0)
    loss = jnp.mean((avg_flow * mask - prob * mask) ** 2)
    return loss, avg_flow[0, 0:10, :]


if __name__ == "__main__":
    nb, nf, nr, n_pix = 2, 128, 4, 64

    key = jax.random.PRNGKey(0)
    k_flow, k_prob, k_aggr = jax.random.split(key, 3)
    flow = jax.random.normal(k_flow, (nb, nf, nr, nr, 2), dtype=jnp.float32)
    prob = jax.random.normal(k_prob, (nb, nf, 2), dtype=jnp.float32)
    aggr_info = jax.random.randint(k_aggr, (nb, n_pix), 0, nf, dtype=jnp.int32)

    loss, avg10 = tex_cycle(flow, prob, aggr_info)
    jax.block_until_ready((loss, avg10))

    loss_ref, avg10_ref = tex_cycle_ref(flow, prob, aggr_info)
    assert jnp.allclose(loss, loss_ref, atol=1e-5, rtol=1e-5), (loss, loss_ref)
    assert jnp.allclose(avg10, avg10_ref, atol=1e-5, rtol=1e-5)

    print("KERNEL_OK")
</pallas_src>

<mosaic_0001>
module attributes {stable_mosaic.version = 11 : i64} {
  func.func @_texcycle_kernel(%arg0: i32, %arg1: memref<2x128x32xf32, #tpu.memory_space<vmem>>, %arg2: memref<2x128x2xf32, #tpu.memory_space<vmem>>, %arg3: memref<2x1x64xi32, #tpu.memory_space<vmem>>, %arg4: memref<1x8x128xf32, #tpu.memory_space<vmem>>, %arg5: memref<1x128x2xf32, #tpu.memory_space<vmem>>) attributes {dimension_semantics = [#tpu.dimension_semantics<parallel>], iteration_bounds = array<i64: 1>, scalar_prefetch = 0 : i64, scratch_operands = 0 : i64, tpu.core_type = #tpu.core_type<tc>, window_params = [{transform_indices = @transform_0, window_bounds = array<i64: 2, 128, 32>}, {transform_indices = @transform_1, window_bounds = array<i64: 2, 128, 2>}, {transform_indices = @transform_2, window_bounds = array<i64: 2, 1, 64>}, {transform_indices = @transform_3, window_bounds = array<i64: 1, 8, 128>}, {transform_indices = @transform_4, window_bounds = array<i64: 1, 128, 2>}]} {
    %0 = tpu.iota {dimensions = array<i32: 0>} : vector<32x2xi32>
    %1 = tpu.iota {dimensions = array<i32: 1>} : vector<32x2xi32>
    %c2_i32 = arith.constant 2 : i32
    %c0_i32 = arith.constant 0 : i32
    %2 = arith.cmpi eq, %c2_i32, %c0_i32 : i32
    %c1_i32 = arith.constant 1 : i32
    %3 = arith.select %2, %c1_i32, %c2_i32 : i32
    %4 = vector.broadcast %3 : i32 to vector<32x2xi32>
    %5 = arith.remsi %0, %4 : vector<32x2xi32>
    %c0_i32_0 = arith.constant 0 : i32
    %6 = vector.broadcast %c0_i32_0 : i32 to vector<32x2xi32>
    %7 = arith.cmpi ne, %5, %6 : vector<32x2xi32>
    %c0_i32_1 = arith.constant 0 : i32
    %8 = vector.broadcast %c0_i32_1 : i32 to vector<32x2xi32>
    %9 = arith.cmpi slt, %5, %8 : vector<32x2xi32>
    %c0_i32_2 = arith.constant 0 : i32
    %10 = arith.cmpi slt, %3, %c0_i32_2 : i32
    %11 = vector.broadcast %10 : i1 to vector<32x2xi1>
    %12 = vector.broadcast %11 : vector<32x2xi1> to vector<32x2xi1>
    %13 = arith.xori %9, %12 : vector<32x2xi1>
    %14 = arith.andi %13, %7 : vector<32x2xi1>
    %15 = vector.broadcast %3 : i32 to vector<32x2xi32>
    %16 = arith.addi %5, %15 : vector<32x2xi32>
    %17 = arith.select %14, %16, %5 : vector<32x2xi1>, vector<32x2xi32>
    %18 = arith.cmpi eq, %17, %1 : vector<32x2xi32>
    %cst = arith.constant 6.250000e-02 : f32
    %cst_3 = arith.constant 0.000000e+00 : f32
    %19 = vector.broadcast %cst : f32 to vector<32x2xf32>
    %20 = vector.broadcast %cst_3 : f32 to vector<32x2xf32>
    %21 = arith.select %18, %19, %20 : vector<32x2xi1>, vector<32x2xf32>
    %22 = tpu.iota {dimensions = array<i32: 0>} : vector<128x64xi32>
    %cst_4 = arith.constant 0.000000e+00 : f32
    %23 = vector.broadcast %cst_4 : f32 to vector<128x2xf32>
    %c0 = arith.constant 0 : index
    %c0_5 = arith.constant 0 : index
    %c0_6 = arith.constant 0 : index
    %24 = vector.load %arg1[%c0, %c0_5, %c0_6] : memref<2x128x32xf32, #tpu.memory_space<vmem>>, vector<1x128x32xf32>
    %25 = vector.shape_cast %24 : vector<1x128x32xf32> to vector<128x32xf32>
    %cst_7 = arith.constant dense<0.000000e+00> : vector<128x2xf32>
    %26 = tpu.matmul %25, %21, %cst_7 {dimension_numbers = #tpu.dot_dimension_numbers<[1], [0], [0], [1], [0, 0, 1, 1], [], []>} : vector<128x32xf32>, vector<32x2xf32>, vector<128x2xf32> -> vector<128x2xf32>
    %c0_8 = arith.constant 0 : index
    %c0_9 = arith.constant 0 : index
    %c0_10 = arith.constant 0 : index
    %27 = vector.load %arg5[%c0_8, %c0_9, %c0_10] : memref<1x128x2xf32, #tpu.memory_space<vmem>>, vector<1x128x2xf32>
    %28 = vector.shape_cast %27 : vector<1x128x2xf32> to vector<128x2xf32>
    %29 = vector.shape_cast %26 : vector<128x2xf32> to vector<1x128x2xf32>
    tpu.vector_store %arg5[%c0_8, %c0_9, %c0_10], %29 {strides = array<i32>} : memref<1x128x2xf32, #tpu.memory_space<vmem>>, vector<1x128x2xf32>,
    %c0_11 = arith.constant 0 : index
    %c0_12 = arith.constant 0 : index
    %c0_13 = arith.constant 0 : index
    %30 = vector.load %arg3[%c0_11, %c0_12, %c0_13] : memref<2x1x64xi32, #tpu.memory_space<vmem>>, vector<1x1x64xi32>
    %31 = vector.shape_cast %30 : vector<1x1x64xi32> to vector<1x64xi32>
    %32 = vector.broadcast %31 : vector<1x64xi32> to vector<128x64xi32>
    %33 = arith.cmpi eq, %22, %32 : vector<128x64xi32>
    %cst_14 = arith.constant 1.000000e+00 : f32
    %cst_15 = arith.constant 0.000000e+00 : f32
    %34 = vector.broadcast %cst_14 : f32 to vector<128x64xf32>
    %35 = vector.broadcast %cst_15 : f32 to vector<128x64xf32>
    %36 = arith.select %33, %34, %35 : vector<128x64xi1>, vector<128x64xf32>
    %cst_16 = arith.constant dense<0xFF800000> : vector<128xf32>
    %37 = vector.multi_reduction <maximumf>, %36, %cst_16 [1] : vector<128x64xf32> to vector<128xf32>
    %cst_17 = arith.constant 0.000000e+00 : f32
    %38 = vector.broadcast %cst_17 : f32 to vector<128xf32>
    %39 = arith.cmpf ogt, %37, %38 : vector<128xf32>
    %40 = vector.shape_cast %39 : vector<128xi1> to vector<128x1xi1>
    %c0_18 = arith.constant 0 : index
    %c0_19 = arith.constant 0 : index
    %c0_20 = arith.constant 0 : index
    %41 = vector.load %arg2[%c0_18, %c0_19, %c0_20] : memref<2x128x2xf32, #tpu.memory_space<vmem>>, vector<1x128x2xf32>
    %42 = vector.shape_cast %41 : vector<1x128x2xf32> to vector<128x2xf32>
    %43 = arith.subf %26, %42 : vector<128x2xf32>
    %cst_21 = arith.constant 0.000000e+00 : f32
    %44 = vector.shape_cast %40 : vector<128x1xi1> to vector<128x1xi1>
    %45 = vector.broadcast %44 : vector<128x1xi1> to vector<128x2xi1>
    %46 = vector.broadcast %cst_21 : f32 to vector<128x2xf32>
    %47 = arith.select %45, %43, %46 : vector<128x2xi1>, vector<128x2xf32>
    %48 = arith.mulf %47, %47 : vector<128x2xf32>
    %49 = arith.addf %23, %48 : vector<128x2xf32>
    %c1 = arith.constant 1 : index
    %c0_22 = arith.constant 0 : index
    %c0_23 = arith.constant 0 : index
    %50 = vector.load %arg1[%c1, %c0_22, %c0_23] : memref<2x128x32xf32, #tpu.memory_space<vmem>>, vector<1x128x32xf32>
    %51 = vector.shape_cast %50 : vector<1x128x32xf32> to vector<128x32xf32>
    %cst_24 = arith.constant dense<0.000000e+00> : vector<128x2xf32>
    %52 = tpu.matmul %51, %21, %cst_24 {dimension_numbers = #tpu.dot_dimension_numbers<[1], [0], [0], [1], [0, 0, 1, 1], [], []>} : vector<128x32xf32>, vector<32x2xf32>, vector<128x2xf32> -> vector<128x2xf32>
    %c1_25 = arith.constant 1 : index
    %c0_26 = arith.constant 0 : index
    %c0_27 = arith.constant 0 : index
    %53 = vector.load %arg3[%c1_25, %c0_26, %c0_27] : memref<2x1x64xi32, #tpu.memory_space<vmem>>, vector<1x1x64xi32>
    %54 = vector.shape_cast %53 : vector<1x1x64xi32> to vector<1x64xi32>
    %55 = vector.broadcast %54 : vector<1x64xi32> to vector<128x64xi32>
    %56 = arith.cmpi eq, %22, %55 : vector<128x64xi32>
    %cst_28 = arith.constant 1.000000e+00 : f32
    %cst_29 = arith.constant 0.000000e+00 : f32
    %57 = vector.broadcast %cst_28 : f32 to vector<128x64xf32>
    %58 = vector.broadcast %cst_29 : f32 to vector<128x64xf32>
    %59 = arith.select %56, %57, %58 : vector<128x64xi1>, vector<128x64xf32>
    %cst_30 = arith.constant dense<0xFF800000> : vector<128xf32>
    %60 = vector.multi_reduction <maximumf>, %59, %cst_30 [1] : vector<128x64xf32> to vector<128xf32>
    %cst_31 = arith.constant 0.000000e+00 : f32
    %61 = vector.broadcast %cst_31 : f32 to vector<128xf32>
    %62 = arith.cmpf ogt, %60, %61 : vector<128xf32>
    %63 = vector.shape_cast %62 : vector<128xi1> to vector<128x1xi1>
    %c1_32 = arith.constant 1 : index
    %c0_33 = arith.constant 0 : index
    %c0_34 = arith.constant 0 : index
    %64 = vector.load %arg2[%c1_32, %c0_33, %c0_34] : memref<2x128x2xf32, #tpu.memory_space<vmem>>, vector<1x128x2xf32>
    %65 = vector.shape_cast %64 : vector<1x128x2xf32> to vector<128x2xf32>
    %66 = arith.subf %52, %65 : vector<128x2xf32>
    %cst_35 = arith.constant 0.000000e+00 : f32
    %67 = vector.shape_cast %63 : vector<128x1xi1> to vector<128x1xi1>
    %68 = vector.broadcast %67 : vector<128x1xi1> to vector<128x2xi1>
    %69 = vector.broadcast %cst_35 : f32 to vector<128x2xf32>
    %70 = arith.select %68, %66, %69 : vector<128x2xi1>, vector<128x2xf32>
    %71 = arith.mulf %70, %70 : vector<128x2xf32>
    %72 = arith.addf %49, %71 : vector<128x2xf32>
    %73 = vector.shape_cast %72 : vector<128x2xf32> to vector<1x128x2xf32>
    %cst_36 = arith.constant dense<0.000000e+00> : vector<1xf32>
    %74 = vector.multi_reduction <add>, %73, %cst_36 [1, 2] : vector<1x128x2xf32> to vector<1xf32>
    %75 = vector.shape_cast %74 : vector<1xf32> to vector<1x1x1xf32>
    %76 = vector.extract %75[0, 0, 0] : f32 from vector<1x1x1xf32>
    %cst_37 = arith.constant 0.001953125 : f32
    %77 = arith.mulf %76, %cst_37 : f32
    %cst_38 = arith.constant 0.000000e+00 : f32
    %78 = vector.broadcast %cst_38 : f32 to vector<8x128xf32>
    %79 = vector.broadcast %77 : f32 to vector<8x128xf32>
    %80 = arith.addf %78, %79 : vector<8x128xf32>
    %c0_39 = arith.constant 0 : index
    %c0_40 = arith.constant 0 : index
    %c0_41 = arith.constant 0 : index
    %81 = vector.load %arg4[%c0_39, %c0_40, %c0_41] : memref<1x8x128xf32, #tpu.memory_space<vmem>>, vector<1x8x128xf32>
    %82 = vector.shape_cast %81 : vector<1x8x128xf32> to vector<8x128xf32>
    %83 = vector.shape_cast %80 : vector<8x128xf32> to vector<1x8x128xf32>
    tpu.vector_store %arg4[%c0_39, %c0_40, %c0_41], %83 {strides = array<i32>} : memref<1x8x128xf32, #tpu.memory_space<vmem>>, vector<1x8x128xf32>,
    return
  }
  func.func @transform_0(%arg0: i32) -> (i32, i32, i32) {
    %c0_i32 = arith.constant 0 : i32
    %c0_i32_0 = arith.constant 0 : i32
    %c0_i32_1 = arith.constant 0 : i32
    return %arg0, %c0_i32, %c0_i32_0 : i32, i32, i32
  }
  func.func @transform_1(%arg0: i32) -> (i32, i32, i32) {
    %c0_i32 = arith.constant 0 : i32
    %c0_i32_0 = arith.constant 0 : i32
    %c0_i32_1 = arith.constant 0 : i32
    return %arg0, %c0_i32, %c0_i32_0 : i32, i32, i32
  }
  func.func @transform_2(%arg0: i32) -> (i32, i32, i32) {
    %c0_i32 = arith.constant 0 : i32
    %c0_i32_0 = arith.constant 0 : i32
    %c0_i32_1 = arith.constant 0 : i32
    return %arg0, %c0_i32, %c0_i32_0 : i32, i32, i32
  }
  func.func @transform_3(%arg0: i32) -> (i32, i32, i32) {
    %c0_i32 = arith.constant 0 : i32
    %c0_i32_0 = arith.constant 0 : i32
    %c0_i32_1 = arith.constant 0 : i32
    return %arg0, %c0_i32, %c0_i32_0 : i32, i32, i32
  }
  func.func @transform_4(%arg0: i32) -> (i32, i32, i32) {
    %c0_i32 = arith.constant 0 : i32
    %c0_i32_0 = arith.constant 0 : i32
    %c0_i32_1 = arith.constant 0 : i32
    return %arg0, %c0_i32, %c0_i32_0 : i32, i32, i32
  }
}

</mosaic_0001>

<llo_original>
// kernel: tpu_custom_call.1
$region0: #{tpu_custom_call.1}
  #allocation0 [shape = 'u32[]', space=smem, size = 0x4, offset = 0x4, fixed_abs, tag = 'smem constant byte address 0x4 - core index']
  #allocation1 [shape = 'u32[72,128]{1,0:T(1,128)}', space=vmem, size = 0x9000, scoped, tag = 'internal scratch']
  %s0 = inlined_call_operand.vmem [shape: f32[2,128,32], index: 0, kind: input, shape index: {}]
  %s1 = inlined_call_operand.vmem [shape: f32[2,128,2], index: 1, kind: input, shape index: {}]
  %s2 = inlined_call_operand.vmem [shape: s32[2,1,64], index: 2, kind: input, shape index: {}]
  %s3 = inlined_call_operand.hbm [shape: f32[1,8,128], index: 3, kind: output, shape index: {0}]
  %s4 = inlined_call_operand.vmem [shape: f32[1,128,2], index: 4, kind: output, shape index: {1}]
  %5 = xla_tuple %s3, %s4
  %s6 = sld [smem:[#allocation0]]
  $region30: #{tpu_custom_call.1} parent=0
    _
  %s8 = ssub.s32 1, %s6
  %s9 = scalar_select 0, %s8, %s6
  $region1: #{tpu_custom_call.1} parent=0
    #allocation2 [shape = 'u8[4096]{0}', space=vmem, size = 0x1000, scoped, tag = 'output window, operand 0, single buffered']
    #allocation3 [shape = 's32[1]{0}', space=sflag, size = 0x4, scoped, tag = 'scoped memory for tpu_custom_call.1']
    %10 = vsyncpa [#allocation3], 0
    // Predicated region
    $region2: #{tpu_custom_call.1} parent=1 // pred_check
      _
    $region3: #{tpu_custom_call.1} parent=1 // pred_check_branch
      %12 = sbr.rel (0) target = $region5
    $region4: #{tpu_custom_call.1} parent=1 // pred_region
      _
    $region5: #{tpu_custom_call.1} parent=1 // pred_fallthru
      _
    // Predicated region
    $region6: #{tpu_custom_call.1} parent=1 // pred_check
      _
    $region7: #{tpu_custom_call.1} parent=1 // pred_check_branch
      %14 = sbr.rel (0) target = $region9
    $region8: #{tpu_custom_call.1} parent=1 // pred_region
      _
    $region9: #{tpu_custom_call.1} parent=1 // pred_fallthru
      _
    // Predicated region
    $region10: #{tpu_custom_call.1} parent=1 // pred_check
      _
    $region11: #{tpu_custom_call.1} parent=1 // pred_check_branch
      %16 = sbr.rel (0) target = $region13
    $region12: #{tpu_custom_call.1} parent=1 // pred_region
      _
    $region13: #{tpu_custom_call.1} parent=1 // pred_fallthru
      _
    %v17 = vlaneseq
    %v18 = vshrl.u32 %v17, 7
    %v19 = vadd.s32 %v18, 8
    %v20 = vadd.s32 %v18, 16
    %v21 = vadd.s32 %v18, 24
    %v22 = vlaneseq
    %v23 = vand.u32 %v22, 127
    %vm24 = vcmp.lt.s32.totalorder %v18, 0
    %v25 = vsub.s32 0, %v18
    %v26 = vsel %vm24, %v25, %v18
    %v27 = vshrl.u32 %v26, 1
    %v28 = vand.u32 %v26, 1
    %v29 = vsub.s32 0, %v28
    %v30 = vsel %vm24, %v29, %v28
    %vm31 = vcmp.lt.s32.totalorder %v19, 0
    %v32 = vsub.s32 0, %v19
    %v33 = vsel %vm31, %v32, %v19
    %v34 = vshrl.u32 %v33, 1
    %v35 = vand.u32 %v33, 1
    %v36 = vsub.s32 0, %v35
    %v37 = vsel %vm31, %v36, %v35
    %vm38 = vcmp.lt.s32.totalorder %v20, 0
    %v39 = vsub.s32 0, %v20
    %v40 = vsel %vm38, %v39, %v20
    %v41 = vshrl.u32 %v40, 1
    %v42 = vand.u32 %v40, 1
    %v43 = vsub.s32 0, %v42
    %v44 = vsel %vm38, %v43, %v42
    %vm45 = vcmp.lt.s32.totalorder %v21, 0
    %v46 = vsub.s32 0, %v21
    %v47 = vsel %vm45, %v46, %v21
    %v48 = vshrl.u32 %v47, 1
    %v49 = vand.u32 %v47, 1
    %v50 = vsub.s32 0, %v49
    %v51 = vsel %vm45, %v50, %v49
    %vm52 = vcmp.ne.s32.totalorder %v30, 0
    %vm53 = vcmp.ne.s32.totalorder %v37, 0
    %vm54 = vcmp.ne.s32.totalorder %v44, 0
    %vm55 = vcmp.ne.s32.totalorder %v51, 0
    %vm56 = vcmp.lt.s32.totalorder %v30, 0
    %vm57 = vcmp.lt.s32.totalorder %v37, 0
    %vm58 = vcmp.lt.s32.totalorder %v44, 0
    %vm59 = vcmp.lt.s32.totalorder %v51, 0
    %vm60 = vmand %vm56, %vm52
    %vm61 = vmand %vm57, %vm53
    %vm62 = vmand %vm58, %vm54
    %vm63 = vmand %vm59, %vm55
    %v64 = vadd.s32 %v30, 2
    %v65 = vadd.s32 %v37, 2
    %v66 = vadd.s32 %v44, 2
    %v67 = vadd.s32 %v51, 2
    %v68 = vsel %vm60, %v64, %v30
    %v69 = vsel %vm61, %v65, %v37
    %v70 = vsel %vm62, %v66, %v44
    %v71 = vsel %vm63, %v67, %v51
    %vm72 = vcmp.eq.s32.totalorder %v68, %v23
    %vm73 = vcmp.eq.s32.totalorder %v69, %v23
    %vm74 = vcmp.eq.s32.totalorder %v70, %v23
    %vm75 = vcmp.eq.s32.totalorder %v71, %v23
    %v76 = vsel %vm72, 0.0625, 0.0
    %v77 = vsel %vm73, 0.0625, 0.0
    %v78 = vsel %vm74, 0.0625, 0.0
    %v79 = vsel %vm75, 0.0625, 0.0
    %v80 = vadd.s32 %v18, 32
    %v81 = vadd.s32 %v18, 40
    %v82 = vadd.s32 %v18, 48
    %v83 = vadd.s32 %v18, 56
    %v84 = vadd.s32 %v18, 64
    %v85 = vadd.s32 %v18, 72
    %v86 = vadd.s32 %v18, 80
    %v87 = vadd.s32 %v18, 88
    %v88 = vadd.s32 %v18, 96
    %v89 = vadd.s32 %v18, 104
    %v90 = vadd.s32 %v18, 112
    %v91 = vadd.s32 %v18, 120
    %v92 = vld [vmem:[%s0] sm:$0xff]
    %v93 = vld [vmem:[%s0 + $0x8] sm:$0xff]
    %v94 = vld [vmem:[%s0 + $0x10] sm:$0xff]
    %v95 = vld [vmem:[%s0 + $0x18] sm:$0xff]
    %v96 = vld [vmem:[%s0 + $0x20] sm:$0xff]
    %v97 = vld [vmem:[%s0 + $0x28] sm:$0xff]
    %v98 = vld [vmem:[%s0 + $0x30] sm:$0xff]
    %v99 = vld [vmem:[%s0 + $0x38] sm:$0xff]
    %v100 = vld [vmem:[%s0 + $0x40] sm:$0xff]
    %v101 = vld [vmem:[%s0 + $0x48] sm:$0xff]
    %v102 = vld [vmem:[%s0 + $0x50] sm:$0xff]
    %v103 = vld [vmem:[%s0 + $0x58] sm:$0xff]
    %v104 = vld [vmem:[%s0 + $0x60] sm:$0xff]
    %v105 = vld [vmem:[%s0 + $0x68] sm:$0xff]
    %v106 = vld [vmem:[%s0 + $0x70] sm:$0xff]
    %v107 = vld [vmem:[%s0 + $0x78] sm:$0xff]
    %vm108 = vcmask 261120
    %v110 = vsel %vm108, %v92, 0
    %v113 = vsel %vm108, %v93, 0
    %v116 = vsel %vm108, %v94, 0
    %v119 = vsel %vm108, %v95, 0
    %v122 = vsel %vm108, %v96, 0
    %v125 = vsel %vm108, %v97, 0
    %v128 = vsel %vm108, %v98, 0
    %v131 = vsel %vm108, %v99, 0
    %v134 = vsel %vm108, %v100, 0
    %v137 = vsel %vm108, %v101, 0
    %v140 = vsel %vm108, %v102, 0
    %v143 = vsel %vm108, %v103, 0
    %v146 = vsel %vm108, %v104, 0
    %v149 = vsel %vm108, %v105, 0
    %v152 = vsel %vm108, %v106, 0
    %v155 = vsel %vm108, %v107, 0
    %157 = vmatpush.msra.mxu0 0.0
    %158 = vmatpush.msra.mxu0 0.0
    %159 = vmatpush.msra.mxu0 0.0
    %160 = vmatpush.msra.mxu0 0.0
    %161 = vmatpush.msra.mxu0 0.0
    %162 = vmatpush.msra.mxu0 0.0
    %163 = vmatpush.msra.mxu0 0.0
    %164 = vmatpush.msra.mxu0 0.0
    %165 = vmatpush.msra.mxu0 0.0
    %166 = vmatpush.msra.mxu0 0.0
    %167 = vmatpush.msra.mxu0 0.0
    %168 = vmatpush.msra.mxu0 0.0
    %169 = vmatpush.msra.mxu0 %v79
    %170 = vmatpush.msra.mxu0 %v78
    %171 = vmatpush.msra.mxu0 %v77
    %172 = vmatpush.msra.mxu0 %v76
    %173 = vmatmul.f32.gmra.mxu0 %v110
    %v174 = vpop.f32.mrf.mxu0
    %v175 = vadd.f32 0.0, %v174
    %176 = vmatmul.f32.gmra.mxu0 %v113
    %v177 = vpop.f32.mrf.mxu0
    %v178 = vadd.f32 0.0, %v177
    %179 = vmatmul.f32.gmra.mxu0 %v116
    %v180 = vpop.f32.mrf.mxu0
    %v181 = vadd.f32 0.0, %v180
    %182 = vmatmul.f32.gmra.mxu0 %v119
    %v183 = vpop.f32.mrf.mxu0
    %v184 = vadd.f32 0.0, %v183
    %185 = vmatmul.f32.gmra.mxu0 %v122
    %v186 = vpop.f32.mrf.mxu0
    %v187 = vadd.f32 0.0, %v186
    %188 = vmatmul.f32.gmra.mxu0 %v125
    %v189 = vpop.f32.mrf.mxu0
    %v190 = vadd.f32 0.0, %v189
    %191 = vmatmul.f32.gmra.mxu0 %v128
    %v192 = vpop.f32.mrf.mxu0
    %v193 = vadd.f32 0.0, %v192
    %194 = vmatmul.f32.gmra.mxu0 %v131
    %v195 = vpop.f32.mrf.mxu0
    %v196 = vadd.f32 0.0, %v195
    %197 = vmatmul.f32.gmra.mxu0 %v134
    %v198 = vpop.f32.mrf.mxu0
    %v199 = vadd.f32 0.0, %v198
    %200 = vmatmul.f32.gmra.mxu0 %v137
    %v201 = vpop.f32.mrf.mxu0
    %v202 = vadd.f32 0.0, %v201
    %203 = vmatmul.f32.gmra.mxu0 %v140
    %v204 = vpop.f32.mrf.mxu0
    %v205 = vadd.f32 0.0, %v204
    %206 = vmatmul.f32.gmra.mxu0 %v143
    %v207 = vpop.f32.mrf.mxu0
    %v208 = vadd.f32 0.0, %v207
    %209 = vmatmul.f32.gmra.mxu0 %v146
    %v210 = vpop.f32.mrf.mxu0
    %v211 = vadd.f32 0.0, %v210
    %212 = vmatmul.f32.gmra.mxu0 %v149
    %v213 = vpop.f32.mrf.mxu0
    %v214 = vadd.f32 0.0, %v213
    %215 = vmatmul.f32.gmra.mxu0 %v152
    %v216 = vpop.f32.mrf.mxu0
    %v217 = vadd.f32 0.0, %v216
    %218 = vmatmul.f32.gmra.mxu0 %v155
    %v219 = vpop.f32.mrf.mxu0
    %v220 = vadd.f32 0.0, %v219
    %221 = vdwg.mxu0
    %vm222 = vcmask 15360
    %223 = vst.msk [vmem:[%s4] sm:$0xff] %vm222, %v175
    %224 = vst.msk [vmem:[%s4 + $0x8] sm:$0xff] %vm222, %v178
    %225 = vst.msk [vmem:[%s4 + $0x10] sm:$0xff] %vm222, %v181
    %226 = vst.msk [vmem:[%s4 + $0x18] sm:$0xff] %vm222, %v184
    %227 = vst.msk [vmem:[%s4 + $0x20] sm:$0xff] %vm222, %v187
    %228 = vst.msk [vmem:[%s4 + $0x28] sm:$0xff] %vm222, %v190
    %229 = vst.msk [vmem:[%s4 + $0x30] sm:$0xff] %vm222, %v193
    %230 = vst.msk [vmem:[%s4 + $0x38] sm:$0xff] %vm222, %v196
    %231 = vst.msk [vmem:[%s4 + $0x40] sm:$0xff] %vm222, %v199
    %232 = vst.msk [vmem:[%s4 + $0x48] sm:$0xff] %vm222, %v202
    %233 = vst.msk [vmem:[%s4 + $0x50] sm:$0xff] %vm222, %v205
    %234 = vst.msk [vmem:[%s4 + $0x58] sm:$0xff] %vm222, %v208
    %235 = vst.msk [vmem:[%s4 + $0x60] sm:$0xff] %vm222, %v211
    %236 = vst.msk [vmem:[%s4 + $0x68] sm:$0xff] %vm222, %v214
    %237 = vst.msk [vmem:[%s4 + $0x70] sm:$0xff] %vm222, %v217
    %238 = vst.msk [vmem:[%s4 + $0x78] sm:$0xff] %vm222, %v220
    %v239 = vld [vmem:[%s2] sm:$0x1]
    %v240 = vperm.slane %v239, 0
    %vm241 = vcmp.eq.s32.totalorder %v18, %v240
    %vm242 = vcmp.eq.s32.totalorder %v19, %v240
    %vm243 = vcmp.eq.s32.totalorder %v20, %v240
    %vm244 = vcmp.eq.s32.totalorder %v21, %v240
    %vm245 = vcmp.eq.s32.totalorder %v80, %v240
    %vm246 = vcmp.eq.s32.totalorder %v81, %v240
    %vm247 = vcmp.eq.s32.totalorder %v82, %v240
    %vm248 = vcmp.eq.s32.totalorder %v83, %v240
    %vm249 = vcmp.eq.s32.totalorder %v84, %v240
    %vm250 = vcmp.eq.s32.totalorder %v85, %v240
    %vm251 = vcmp.eq.s32.totalorder %v86, %v240
    %vm252 = vcmp.eq.s32.totalorder %v87, %v240
    %vm253 = vcmp.eq.s32.totalorder %v88, %v240
    %vm254 = vcmp.eq.s32.totalorder %v89, %v240
    %vm255 = vcmp.eq.s32.totalorder %v90, %v240
    %vm256 = vcmp.eq.s32.totalorder %v91, %v240
    %v257 = vsel %vm241, 1.0, 0.0
    %v258 = vsel %vm242, 1.0, 0.0
    %v259 = vsel %vm243, 1.0, 0.0
    %v260 = vsel %vm244, 1.0, 0.0
    %v261 = vsel %vm245, 1.0, 0.0
    %v262 = vsel %vm246, 1.0, 0.0
    %v263 = vsel %vm247, 1.0, 0.0
    %v264 = vsel %vm248, 1.0, 0.0
    %v265 = vsel %vm249, 1.0, 0.0
    %v266 = vsel %vm250, 1.0, 0.0
    %v267 = vsel %vm251, 1.0, 0.0
    %v268 = vsel %vm252, 1.0, 0.0
    %v269 = vsel %vm253, 1.0, 0.0
    %v270 = vsel %vm254, 1.0, 0.0
    %v271 = vsel %vm255, 1.0, 0.0
    %v272 = vsel %vm256, 1.0, 0.0
    %vm273 = vcmask 523264
    %v274 = vsel %vm273, %v257, -inf
    %275 = vmax.xlane.f32.xlu0 %v274
    %v276 = vpop.xlane.xlu0 %275
    %v277 = vsel %vm273, %v258, -inf
    %278 = vmax.xlane.f32.xlu0 %v277
    %v279 = vpop.xlane.xlu0 %278
    %v280 = vsel %vm273, %v259, -inf
    %281 = vmax.xlane.f32.xlu0 %v280
    %v282 = vpop.xlane.xlu0 %281
    %v283 = vsel %vm273, %v260, -inf
    %284 = vmax.xlane.f32.xlu0 %v283
    %v285 = vpop.xlane.xlu0 %284
    %v286 = vsel %vm273, %v261, -inf
    %287 = vmax.xlane.f32.xlu0 %v286
    %v288 = vpop.xlane.xlu0 %287
    %v289 = vsel %vm273, %v262, -inf
    %290 = vmax.xlane.f32.xlu0 %v289
    %v291 = vpop.xlane.xlu0 %290
    %v292 = vsel %vm273, %v263, -inf
    %293 = vmax.xlane.f32.xlu0 %v292
    %v294 = vpop.xlane.xlu0 %293
    %v295 = vsel %vm273, %v264, -inf
    %296 = vmax.xlane.f32.xlu0 %v295
    %v297 = vpop.xlane.xlu0 %296
    %v298 = vsel %vm273, %v265, -inf
    %299 = vmax.xlane.f32.xlu0 %v298
    %v300 = vpop.xlane.xlu0 %299
    %v301 = vsel %vm273, %v266, -inf
    %302 = vmax.xlane.f32.xlu0 %v301
    %v303 = vpop.xlane.xlu0 %302
    %v304 = vsel %vm273, %v267, -inf
    %305 = vmax.xlane.f32.xlu0 %v304
    %v306 = vpop.xlane.xlu0 %305
    %v307 = vsel %vm273, %v268, -inf
    %308 = vmax.xlane.f32.xlu0 %v307
    %v309 = vpop.xlane.xlu0 %308
    %v310 = vsel %vm273, %v269, -inf
    %311 = vmax.xlane.f32.xlu0 %v310
    %v312 = vpop.xlane.xlu0 %311
    %v313 = vsel %vm273, %v270, -inf
    %314 = vmax.xlane.f32.xlu0 %v313
    %v315 = vpop.xlane.xlu0 %314
    %v316 = vsel %vm273, %v271, -inf
    %317 = vmax.xlane.f32.xlu0 %v316
    %v318 = vpop.xlane.xlu0 %317
    %v319 = vsel %vm273, %v272, -inf
    %320 = vmax.xlane.f32.xlu0 %v319
    %v321 = vpop.xlane.xlu0 %320
    %vm322 = vcmp.gt.f32.partialorder %v276, 0.0
    %vm323 = vcmp.gt.f32.partialorder %v279, 0.0
    %vm324 = vcmp.gt.f32.partialorder %v282, 0.0
    %vm325 = vcmp.gt.f32.partialorder %v285, 0.0
    %vm326 = vcmp.gt.f32.partialorder %v288, 0.0
    %vm327 = vcmp.gt.f32.partialorder %v291, 0.0
    %vm328 = vcmp.gt.f32.partialorder %v294, 0.0
    %vm329 = vcmp.gt.f32.partialorder %v297, 0.0
    %vm330 = vcmp.gt.f32.partialorder %v300, 0.0
    %vm331 = vcmp.gt.f32.partialorder %v303, 0.0
    %vm332 = vcmp.gt.f32.partialorder %v306, 0.0
    %vm333 = vcmp.gt.f32.partialorder %v309, 0.0
    %vm334 = vcmp.gt.f32.partialorder %v312, 0.0
    %vm335 = vcmp.gt.f32.partialorder %v315, 0.0
    %vm336 = vcmp.gt.f32.partialorder %v318, 0.0
    %vm337 = vcmp.gt.f32.partialorder %v321, 0.0
    %v338 = vld [vmem:[%s1] sm:$0xff]
    %v339 = vld [vmem:[%s1 + $0x8] sm:$0xff]
    %v340 = vld [vmem:[%s1 + $0x10] sm:$0xff]
    %v341 = vld [vmem:[%s1 + $0x18] sm:$0xff]
    %v342 = vld [vmem:[%s1 + $0x20] sm:$0xff]
    %v343 = vld [vmem:[%s1 + $0x28] sm:$0xff]
    %v344 = vld [vmem:[%s1 + $0x30] sm:$0xff]
    %v345 = vld [vmem:[%s1 + $0x38] sm:$0xff]
    %v346 = vld [vmem:[%s1 + $0x40] sm:$0xff]
    %v347 = vld [vmem:[%s1 + $0x48] sm:$0xff]
    %v348 = vld [vmem:[%s1 + $0x50] sm:$0xff]
    %v349 = vld [vmem:[%s1 + $0x58] sm:$0xff]
    %v350 = vld [vmem:[%s1 + $0x60] sm:$0xff]
    %v351 = vld [vmem:[%s1 + $0x68] sm:$0xff]
    %v352 = vld [vmem:[%s1 + $0x70] sm:$0xff]
    %v353 = vld [vmem:[%s1 + $0x78] sm:$0xff]
    %v354 = vsub.f32 %v175, %v338
    %v355 = vsub.f32 %v178, %v339
    %v356 = vsub.f32 %v181, %v340
    %v357 = vsub.f32 %v184, %v341
    %v358 = vsub.f32 %v187, %v342
    %v359 = vsub.f32 %v190, %v343
    %v360 = vsub.f32 %v193, %v344
    %v361 = vsub.f32 %v196, %v345
    %v362 = vsub.f32 %v199, %v346
    %v363 = vsub.f32 %v202, %v347
    %v364 = vsub.f32 %v205, %v348
    %v365 = vsub.f32 %v208, %v349
    %v366 = vsub.f32 %v211, %v350
    %v367 = vsub.f32 %v214, %v351
    %v368 = vsub.f32 %v217, %v352
    %v369 = vsub.f32 %v220, %v353
    %v370 = vsel %vm322, 1, 0
    %v371 = vsel %vm323, 1, 0
    %v372 = vsel %vm324, 1, 0
    %v373 = vsel %vm325, 1, 0
    %v374 = vsel %vm326, 1, 0
    %v375 = vsel %vm327, 1, 0
    %v376 = vsel %vm328, 1, 0
    %v377 = vsel %vm329, 1, 0
    %v378 = vsel %vm330, 1, 0
    %v379 = vsel %vm331, 1, 0
    %v380 = vsel %vm332, 1, 0
    %v381 = vsel %vm333, 1, 0
    %v382 = vsel %vm334, 1, 0
    %v383 = vsel %vm335, 1, 0
    %v384 = vsel %vm336, 1, 0
    %v385 = vsel %vm337, 1, 0
    %vm386 = vcmp.eq.s32.totalorder %v370, 1
    %vm387 = vcmp.eq.s32.totalorder %v371, 1
    %vm388 = vcmp.eq.s32.totalorder %v372, 1
    %vm389 = vcmp.eq.s32.totalorder %v373, 1
    %vm390 = vcmp.eq.s32.totalorder %v374, 1
    %vm391 = vcmp.eq.s32.totalorder %v375, 1
    %vm392 = vcmp.eq.s32.totalorder %v376, 1
    %vm393 = vcmp.eq.s32.totalorder %v377, 1
    %vm394 = vcmp.eq.s32.totalorder %v378, 1
    %vm395 = vcmp.eq.s32.totalorder %v379, 1
    %vm396 = vcmp.eq.s32.totalorder %v380, 1
    %vm397 = vcmp.eq.s32.totalorder %v381, 1
    %vm398 = vcmp.eq.s32.totalorder %v382, 1
    %vm399 = vcmp.eq.s32.totalorder %v383, 1
    %vm400 = vcmp.eq.s32.totalorder %v384, 1
    %vm401 = vcmp.eq.s32.totalorder %v385, 1
    %v402 = vsel %vm386, %v354, 0.0
    %v403 = vsel %vm387, %v355, 0.0
    %v404 = vsel %vm388, %v356, 0.0
    %v405 = vsel %vm389, %v357, 0.0
    %v406 = vsel %vm390, %v358, 0.0
    %v407 = vsel %vm391, %v359, 0.0
    %v408 = vsel %vm392, %v360, 0.0
    %v409 = vsel %vm393, %v361, 0.0
    %v410 = vsel %vm394, %v362, 0.0
    %v411 = vsel %vm395, %v363, 0.0
    %v412 = vsel %vm396, %v364, 0.0
    %v413 = vsel %vm397, %v365, 0.0
    %v414 = vsel %vm398, %v366, 0.0
    %v415 = vsel %vm399, %v367, 0.0
    %v416 = vsel %vm400, %v368, 0.0
    %v417 = vsel %vm401, %v369, 0.0
    %v418 = vmul.f32 %v402, %v402
    %v419 = vmul.f32 %v403, %v403
    %v420 = vmul.f32 %v404, %v404
    %v421 = vmul.f32 %v405, %v405
    %v422 = vmul.f32 %v406, %v406
    %v423 = vmul.f32 %v407, %v407
    %v424 = vmul.f32 %v408, %v408
    %v425 = vmul.f32 %v409, %v409
    %v426 = vmul.f32 %v410, %v410
    %v427 = vmul.f32 %v411, %v411
    %v428 = vmul.f32 %v412, %v412
    %v429 = vmul.f32 %v413, %v413
    %v430 = vmul.f32 %v414, %v414
    %v431 = vmul.f32 %v415, %v415
    %v432 = vmul.f32 %v416, %v416
    %v433 = vmul.f32 %v417, %v417
    %v434 = vadd.f32 %v418, 0.0
    %v435 = vadd.f32 %v419, 0.0
    %v436 = vadd.f32 %v420, 0.0
    %v437 = vadd.f32 %v421, 0.0
    %v438 = vadd.f32 %v422, 0.0
    %v439 = vadd.f32 %v423, 0.0
    %v440 = vadd.f32 %v424, 0.0
    %v441 = vadd.f32 %v425, 0.0
    %v442 = vadd.f32 %v426, 0.0
    %v443 = vadd.f32 %v427, 0.0
    %v444 = vadd.f32 %v428, 0.0
    %v445 = vadd.f32 %v429, 0.0
    %v446 = vadd.f32 %v430, 0.0
    %v447 = vadd.f32 %v431, 0.0
    %v448 = vadd.f32 %v432, 0.0
    %v449 = vadd.f32 %v433, 0.0
    %s450 = scalar_lea.vmem %s0, 128
    %v451 = vld [vmem:[%s450] sm:$0xff]
    %v452 = vld [vmem:[%s450 + $0x8] sm:$0xff]
    %v453 = vld [vmem:[%s450 + $0x10] sm:$0xff]
    %v454 = vld [vmem:[%s450 + $0x18] sm:$0xff]
    %v455 = vld [vmem:[%s450 + $0x20] sm:$0xff]
    %v456 = vld [vmem:[%s450 + $0x28] sm:$0xff]
    %v457 = vld [vmem:[%s450 + $0x30] sm:$0xff]
    %v458 = vld [vmem:[%s450 + $0x38] sm:$0xff]
    %v459 = vld [vmem:[%s450 + $0x40] sm:$0xff]
    %v460 = vld [vmem:[%s450 + $0x48] sm:$0xff]
    %v461 = vld [vmem:[%s450 + $0x50] sm:$0xff]
    %v462 = vld [vmem:[%s450 + $0x58] sm:$0xff]
    %v463 = vld [vmem:[%s450 + $0x60] sm:$0xff]
    %v464 = vld [vmem:[%s450 + $0x68] sm:$0xff]
    %v465 = vld [vmem:[%s450 + $0x70] sm:$0xff]
    %v466 = vld [vmem:[%s450 + $0x78] sm:$0xff]
    %v468 = vsel %vm108, %v451, 0
    %v471 = vsel %vm108, %v452, 0
    %v474 = vsel %vm108, %v453, 0
    %v477 = vsel %vm108, %v454, 0
    %v480 = vsel %vm108, %v455, 0
    %v483 = vsel %vm108, %v456, 0
    %v486 = vsel %vm108, %v457, 0
    %v489 = vsel %vm108, %v458, 0
    %v492 = vsel %vm108, %v459, 0
    %v495 = vsel %vm108, %v460, 0
    %v498 = vsel %vm108, %v461, 0
    %v501 = vsel %vm108, %v462, 0
    %v504 = vsel %vm108, %v463, 0
    %v507 = vsel %vm108, %v464, 0
    %v510 = vsel %vm108, %v465, 0
    %v513 = vsel %vm108, %v466, 0
    %515 = vmatpush.msra.mxu0 0.0
    %516 = vmatpush.msra.mxu0 0.0
    %517 = vmatpush.msra.mxu0 0.0
    %518 = vmatpush.msra.mxu0 0.0
    %519 = vmatpush.msra.mxu0 0.0
    %520 = vmatpush.msra.mxu0 0.0
    %521 = vmatpush.msra.mxu0 0.0
    %522 = vmatpush.msra.mxu0 0.0
    %523 = vmatpush.msra.mxu0 0.0
    %524 = vmatpush.msra.mxu0 0.0
    %525 = vmatpush.msra.mxu0 0.0
    %526 = vmatpush.msra.mxu0 0.0
    %527 = vmatpush.msra.mxu0 %v79
    %528 = vmatpush.msra.mxu0 %v78
    %529 = vmatpush.msra.mxu0 %v77
    %530 = vmatpush.msra.mxu0 %v76
    %531 = vmatmul.f32.gmra.mxu0 %v468
    %v532 = vpop.f32.mrf.mxu0
    %v533 = vadd.f32 0.0, %v532
    %534 = vmatmul.f32.gmra.mxu0 %v471
    %v535 = vpop.f32.mrf.mxu0
    %v536 = vadd.f32 0.0, %v535
    %537 = vmatmul.f32.gmra.mxu0 %v474
    %v538 = vpop.f32.mrf.mxu0
    %v539 = vadd.f32 0.0, %v538
    %540 = vmatmul.f32.gmra.mxu0 %v477
    %v541 = vpop.f32.mrf.mxu0
    %v542 = vadd.f32 0.0, %v541
    %543 = vmatmul.f32.gmra.mxu0 %v480
    %v544 = vpop.f32.mrf.mxu0
    %v545 = vadd.f32 0.0, %v544
    %546 = vmatmul.f32.gmra.mxu0 %v483
    %v547 = vpop.f32.mrf.mxu0
    %v548 = vadd.f32 0.0, %v547
    %549 = vmatmul.f32.gmra.mxu0 %v486
    %v550 = vpop.f32.mrf.mxu0
    %v551 = vadd.f32 0.0, %v550
    %552 = vmatmul.f32.gmra.mxu0 %v489
    %v553 = vpop.f32.mrf.mxu0
    %v554 = vadd.f32 0.0, %v553
    %555 = vmatmul.f32.gmra.mxu0 %v492
    %v556 = vpop.f32.mrf.mxu0
    %v557 = vadd.f32 0.0, %v556
    %558 = vmatmul.f32.gmra.mxu0 %v495
    %v559 = vpop.f32.mrf.mxu0
    %v560 = vadd.f32 0.0, %v559
    %561 = vmatmul.f32.gmra.mxu0 %v498
    %v562 = vpop.f32.mrf.mxu0
    %v563 = vadd.f32 0.0, %v562
    %564 = vmatmul.f32.gmra.mxu0 %v501
    %v565 = vpop.f32.mrf.mxu0
    %v566 = vadd.f32 0.0, %v565
    %567 = vmatmul.f32.gmra.mxu0 %v504
    %v568 = vpop.f32.mrf.mxu0
    %v569 = vadd.f32 0.0, %v568
    %570 = vmatmul.f32.gmra.mxu0 %v507
    %v571 = vpop.f32.mrf.mxu0
    %v572 = vadd.f32 0.0, %v571
    %573 = vmatmul.f32.gmra.mxu0 %v510
    %v574 = vpop.f32.mrf.mxu0
    %v575 = vadd.f32 0.0, %v574
    %576 = vmatmul.f32.gmra.mxu0 %v513
    %v577 = vpop.f32.mrf.mxu0
    %v578 = vadd.f32 0.0, %v577
    %579 = vdwg.mxu0
    %s580 = scalar_lea.vmem %s2, 1
    %v581 = vld [vmem:[%s580] sm:$0x1]
    %v582 = vperm.slane %v581, 0
    %vm583 = vcmp.eq.s32.totalorder %v18, %v582
    %vm584 = vcmp.eq.s32.totalorder %v19, %v582
    %vm585 = vcmp.eq.s32.totalorder %v20, %v582
    %vm586 = vcmp.eq.s32.totalorder %v21, %v582
    %vm587 = vcmp.eq.s32.totalorder %v80, %v582
    %vm588 = vcmp.eq.s32.totalorder %v81, %v582
    %vm589 = vcmp.eq.s32.totalorder %v82, %v582
    %vm590 = vcmp.eq.s32.totalorder %v83, %v582
    %vm591 = vcmp.eq.s32.totalorder %v84, %v582
    %vm592 = vcmp.eq.s32.totalorder %v85, %v582
    %vm593 = vcmp.eq.s32.totalorder %v86, %v582
    %vm594 = vcmp.eq.s32.totalorder %v87, %v582
    %vm595 = vcmp.eq.s32.totalorder %v88, %v582
    %vm596 = vcmp.eq.s32.totalorder %v89, %v582
    %vm597 = vcmp.eq.s32.totalorder %v90, %v582
    %vm598 = vcmp.eq.s32.totalorder %v91, %v582
    %v599 = vsel %vm583, 1.0, 0.0
    %v600 = vsel %vm584, 1.0, 0.0
    %v601 = vsel %vm585, 1.0, 0.0
    %v602 = vsel %vm586, 1.0, 0.0
    %v603 = vsel %vm587, 1.0, 0.0
    %v604 = vsel %vm588, 1.0, 0.0
    %v605 = vsel %vm589, 1.0, 0.0
    %v606 = vsel %vm590, 1.0, 0.0
    %v607 = vsel %vm591, 1.0, 0.0
    %v608 = vsel %vm592, 1.0, 0.0
    %v609 = vsel %vm593, 1.0, 0.0
    %v610 = vsel %vm594, 1.0, 0.0
    %v611 = vsel %vm595, 1.0, 0.0
    %v612 = vsel %vm596, 1.0, 0.0
    %v613 = vsel %vm597, 1.0, 0.0
    %v614 = vsel %vm598, 1.0, 0.0
    %v615 = vsel %vm273, %v599, -inf
    %616 = vmax.xlane.f32.xlu0 %v615
    %v617 = vpop.xlane.xlu0 %616
    %v618 = vsel %vm273, %v600, -inf
    %619 = vmax.xlane.f32.xlu0 %v618
    %v620 = vpop.xlane.xlu0 %619
    %v621 = vsel %vm273, %v601, -inf
    %622 = vmax.xlane.f32.xlu0 %v621
    %v623 = vpop.xlane.xlu0 %622
    %v624 = vsel %vm273, %v602, -inf
    %625 = vmax.xlane.f32.xlu0 %v624
    %v626 = vpop.xlane.xlu0 %625
    %v627 = vsel %vm273, %v603, -inf
    %628 = vmax.xlane.f32.xlu0 %v627
    %v629 = vpop.xlane.xlu0 %628
    %v630 = vsel %vm273, %v604, -inf
    %631 = vmax.xlane.f32.xlu0 %v630
    %v632 = vpop.xlane.xlu0 %631
    %v633 = vsel %vm273, %v605, -inf
    %634 = vmax.xlane.f32.xlu0 %v633
    %v635 = vpop.xlane.xlu0 %634
    %v636 = vsel %vm273, %v606, -inf
    %637 = vmax.xlane.f32.xlu0 %v636
    %v638 = vpop.xlane.xlu0 %637
    %v639 = vsel %vm273, %v607, -inf
    %640 = vmax.xlane.f32.xlu0 %v639
    %v641 = vpop.xlane.xlu0 %640
    %v642 = vsel %vm273, %v608, -inf
    %643 = vmax.xlane.f32.xlu0 %v642
    %v644 = vpop.xlane.xlu0 %643
    %v645 = vsel %vm273, %v609, -inf
    %646 = vmax.xlane.f32.xlu0 %v645
    %v647 = vpop.xlane.xlu0 %646
    %v648 = vsel %vm273, %v610, -inf
    %649 = vmax.xlane.f32.xlu0 %v648
    %v650 = vpop.xlane.xlu0 %649
    %v651 = vsel %vm273, %v611, -inf
    %652 = vmax.xlane.f32.xlu0 %v651
    %v653 = vpop.xlane.xlu0 %652
    %v654 = vsel %vm273, %v612, -inf
    %655 = vmax.xlane.f32.xlu0 %v654
    %v656 = vpop.xlane.xlu0 %655
    %v657 = vsel %vm273, %v613, -inf
    %658 = vmax.xlane.f32.xlu0 %v657
    %v659 = vpop.xlane.xlu0 %658
    %v660 = vsel %vm273, %v614, -inf
    %661 = vmax.xlane.f32.xlu0 %v660
    %v662 = vpop.xlane.xlu0 %661
    %vm663 = vcmp.gt.f32.partialorder %v617, 0.0
    %vm664 = vcmp.gt.f32.partialorder %v620, 0.0
    %vm665 = vcmp.gt.f32.partialorder %v623, 0.0
    %vm666 = vcmp.gt.f32.partialorder %v626, 0.0
    %vm667 = vcmp.gt.f32.partialorder %v629, 0.0
    %vm668 = vcmp.gt.f32.partialorder %v632, 0.0
    %vm669 = vcmp.gt.f32.partialorder %v635, 0.0
    %vm670 = vcmp.gt.f32.partialorder %v638, 0.0
    %vm671 = vcmp.gt.f32.partialorder %v641, 0.0
    %vm672 = vcmp.gt.f32.partialorder %v644, 0.0
    %vm673 = vcmp.gt.f32.partialorder %v647, 0.0
    %vm674 = vcmp.gt.f32.partialorder %v650, 0.0
    %vm675 = vcmp.gt.f32.partialorder %v653, 0.0
    %vm676 = vcmp.gt.f32.partialorder %v656, 0.0
    %vm677 = vcmp.gt.f32.partialorder %v659, 0.0
    %vm678 = vcmp.gt.f32.partialorder %v662, 0.0
    %s679 = scalar_lea.vmem %s1, 128
    %v680 = vld [vmem:[%s679] sm:$0xff]
    %v681 = vld [vmem:[%s679 + $0x8] sm:$0xff]
    %v682 = vld [vmem:[%s679 + $0x10] sm:$0xff]
    %v683 = vld [vmem:[%s679 + $0x18] sm:$0xff]
    %v684 = vld [vmem:[%s679 + $0x20] sm:$0xff]
    %v685 = vld [vmem:[%s679 + $0x28] sm:$0xff]
    %v686 = vld [vmem:[%s679 + $0x30] sm:$0xff]
    %v687 = vld [vmem:[%s679 + $0x38] sm:$0xff]
    %v688 = vld [vmem:[%s679 + $0x40] sm:$0xff]
    %v689 = vld [vmem:[%s679 + $0x48] sm:$0xff]
    %v690 = vld [vmem:[%s679 + $0x50] sm:$0xff]
    %v691 = vld [vmem:[%s679 + $0x58] sm:$0xff]
    %v692 = vld [vmem:[%s679 + $0x60] sm:$0xff]
    %v693 = vld [vmem:[%s679 + $0x68] sm:$0xff]
    %v694 = vld [vmem:[%s679 + $0x70] sm:$0xff]
    %v695 = vld [vmem:[%s679 + $0x78] sm:$0xff]
    %v696 = vsub.f32 %v533, %v680
    %v697 = vsub.f32 %v536, %v681
    %v698 = vsub.f32 %v539, %v682
    %v699 = vsub.f32 %v542, %v683
    %v700 = vsub.f32 %v545, %v684
    %v701 = vsub.f32 %v548, %v685
    %v702 = vsub.f32 %v551, %v686
    %v703 = vsub.f32 %v554, %v687
    %v704 = vsub.f32 %v557, %v688
    %v705 = vsub.f32 %v560, %v689
    %v706 = vsub.f32 %v563, %v690
    %v707 = vsub.f32 %v566, %v691
    %v708 = vsub.f32 %v569, %v692
    %v709 = vsub.f32 %v572, %v693
    %v710 = vsub.f32 %v575, %v694
    %v711 = vsub.f32 %v578, %v695
    %v712 = vsel %vm663, 1, 0
    %v713 = vsel %vm664, 1, 0
    %v714 = vsel %vm665, 1, 0
    %v715 = vsel %vm666, 1, 0
    %v716 = vsel %vm667, 1, 0
    %v717 = vsel %vm668, 1, 0
    %v718 = vsel %vm669, 1, 0
    %v719 = vsel %vm670, 1, 0
    %v720 = vsel %vm671, 1, 0
    %v721 = vsel %vm672, 1, 0
    %v722 = vsel %vm673, 1, 0
    %v723 = vsel %vm674, 1, 0
    %v724 = vsel %vm675, 1, 0
    %v725 = vsel %vm676, 1, 0
    %v726 = vsel %vm677, 1, 0
    %v727 = vsel %vm678, 1, 0
    %vm728 = vcmp.eq.s32.totalorder %v712, 1
    %vm729 = vcmp.eq.s32.totalorder %v713, 1
    %vm730 = vcmp.eq.s32.totalorder %v714, 1
    %vm731 = vcmp.eq.s32.totalorder %v715, 1
    %vm732 = vcmp.eq.s32.totalorder %v716, 1
    %vm733 = vcmp.eq.s32.totalorder %v717, 1
    %vm734 = vcmp.eq.s32.totalorder %v718, 1
    %vm735 = vcmp.eq.s32.totalorder %v719, 1
    %vm736 = vcmp.eq.s32.totalorder %v720, 1
    %vm737 = vcmp.eq.s32.totalorder %v721, 1
    %vm738 = vcmp.eq.s32.totalorder %v722, 1
    %vm739 = vcmp.eq.s32.totalorder %v723, 1
    %vm740 = vcmp.eq.s32.totalorder %v724, 1
    %vm741 = vcmp.eq.s32.totalorder %v725, 1
    %vm742 = vcmp.eq.s32.totalorder %v726, 1
    %vm743 = vcmp.eq.s32.totalorder %v727, 1
    %v744 = vsel %vm728, %v696, 0.0
    %v745 = vsel %vm729, %v697, 0.0
    %v746 = vsel %vm730, %v698, 0.0
    %v747 = vsel %vm731, %v699, 0.0
    %v748 = vsel %vm732, %v700, 0.0
    %v749 = vsel %vm733, %v701, 0.0
    %v750 = vsel %vm734, %v702, 0.0
    %v751 = vsel %vm735, %v703, 0.0
    %v752 = vsel %vm736, %v704, 0.0
    %v753 = vsel %vm737, %v705, 0.0
    %v754 = vsel %vm738, %v706, 0.0
    %v755 = vsel %vm739, %v707, 0.0
    %v756 = vsel %vm740, %v708, 0.0
    %v757 = vsel %vm741, %v709, 0.0
    %v758 = vsel %vm742, %v710, 0.0
    %v759 = vsel %vm743, %v711, 0.0
    %v760 = vmul.f32 %v744, %v744
    %v761 = vmul.f32 %v745, %v745
    %v762 = vmul.f32 %v746, %v746
    %v763 = vmul.f32 %v747, %v747
    %v764 = vmul.f32 %v748, %v748
    %v765 = vmul.f32 %v749, %v749
    %v766 = vmul.f32 %v750, %v750
    %v767 = vmul.f32 %v751, %v751
    %v768 = vmul.f32 %v752, %v752
    %v769 = vmul.f32 %v753, %v753
    %v770 = vmul.f32 %v754, %v754
    %v771 = vmul.f32 %v755, %v755
    %v772 = vmul.f32 %v756, %v756
    %v773 = vmul.f32 %v757, %v757
    %v774 = vmul.f32 %v758, %v758
    %v775 = vmul.f32 %v759, %v759
    %v776 = vadd.f32 %v434, %v760
    %v777 = vadd.f32 %v435, %v761
    %v778 = vadd.f32 %v436, %v762
    %v779 = vadd.f32 %v437, %v763
    %v780 = vadd.f32 %v438, %v764
    %v781 = vadd.f32 %v439, %v765
    %v782 = vadd.f32 %v440, %v766
    %v783 = vadd.f32 %v441, %v767
    %v784 = vadd.f32 %v442, %v768
    %v785 = vadd.f32 %v443, %v769
    %v786 = vadd.f32 %v444, %v770
    %v787 = vadd.f32 %v445, %v771
    %v788 = vadd.f32 %v446, %v772
    %v789 = vadd.f32 %v447, %v773
    %v790 = vadd.f32 %v448, %v774
    %v791 = vadd.f32 %v449, %v775
    %v792 = vsel %vm222, %v776, 0.0
    %v793 = vsel %vm222, %v777, 0.0
    %v794 = vadd.f32 %v792, %v793
    %v795 = vsel %vm222, %v778, 0.0
    %v796 = vadd.f32 %v794, %v795
    %v797 = vsel %vm222, %v779, 0.0
    %v798 = vadd.f32 %v796, %v797
    %v799 = vsel %vm222, %v780, 0.0
    %v800 = vadd.f32 %v798, %v799
    %v801 = vsel %vm222, %v781, 0.0
    %v802 = vadd.f32 %v800, %v801
    %v803 = vsel %vm222, %v782, 0.0
    %v804 = vadd.f32 %v802, %v803
    %v805 = vsel %vm222, %v783, 0.0
    %v806 = vadd.f32 %v804, %v805
    %v807 = vsel %vm222, %v784, 0.0
    %v808 = vadd.f32 %v806, %v807
    %v809 = vsel %vm222, %v785, 0.0
    %v810 = vadd.f32 %v808, %v809
    %v811 = vsel %vm222, %v786, 0.0
    %v812 = vadd.f32 %v810, %v811
    %v813 = vsel %vm222, %v787, 0.0
    %v814 = vadd.f32 %v812, %v813
    %v815 = vsel %vm222, %v788, 0.0
    %v816 = vadd.f32 %v814, %v815
    %v817 = vsel %vm222, %v789, 0.0
    %v818 = vadd.f32 %v816, %v817
    %v819 = vsel %vm222, %v790, 0.0
    %v820 = vadd.f32 %v818, %v819
    %v821 = vsel %vm222, %v791, 0.0
    %v822 = vadd.f32 %v820, %v821
    %823 = vadd.xlane.f32.xlu0 %v822
    %v824 = vpop.xlane.xlu0 %823
    %v825 = vrot.slane %v824, 4
    %v826 = vadd.f32 %v824, %v825
    %v827 = vrot.slane %v826, 2
    %v828 = vadd.f32 %v826, %v827
    %v829 = vrot.slane %v828, 1
    %v830 = vadd.f32 %v828, %v829
    %s831 = vtos %v830
    %s832 = smul.f32 %s831, 0.001953125
    %v833 = vstv %s832
    %v834 = vadd.f32 %v833, 0.0
    %835 = vst [vmem:[#allocation2] sm:$0xff] %v834
    // Predicated region
    $region14: #{tpu_custom_call.1} parent=1 // pred_check
      _
    $region15: #{tpu_custom_call.1} parent=1 // pred_check_branch
      %837 = sbr.rel (0) target = $region17
    $region16: #{tpu_custom_call.1} parent=1 // pred_region
      %839 = vsyncadd [#allocation3], 0
      %s841 = sshll.u32 [#allocation2], 4
      %s842 = int_to_ptr.vmem [resolvable:$true] %s841
      %s843 = sshll.u32 %s3, 4
      %s844 = int_to_ptr.hbm [resolvable:$true] %s843
      %846 = dma.vmem_to_hbm [thread:$0]  %s842, 128, %s844, [#allocation3]
    $region17: #{tpu_custom_call.1} parent=1 // pred_fallthru
      _
    // Predicated region
    $region18: #{tpu_custom_call.1} parent=1 // pred_check
      _
    $region19: #{tpu_custom_call.1} parent=1 // pred_check_branch
      %848 = sbr.rel (0) target = $region21
    $region20: #{tpu_custom_call.1} parent=1 // pred_region
      _
    $region21: #{tpu_custom_call.1} parent=1 // pred_fallthru
      _
    // Predicated region
    $region22: #{tpu_custom_call.1} parent=1 // pred_check
      _
    $region23: #{tpu_custom_call.1} parent=1 // pred_check_branch
      %850 = sbr.rel (0) target = $region25
    $region24: #{tpu_custom_call.1} parent=1 // pred_region
      %852 = dma.done [#allocation3], 128
    $region25: #{tpu_custom_call.1} parent=1 // pred_fallthru
      _
    // Predicated region
    $region26: #{tpu_custom_call.1} parent=1 // pred_check
      _
    $region27: #{tpu_custom_call.1} parent=1 // pred_check_branch
      %854 = sbr.rel (0) target = $region29
    $region28: #{tpu_custom_call.1} parent=1 // pred_region
      _
    $region29: #{tpu_custom_call.1} parent=1 // pred_fallthru
      _
    %855 = vsyncpa [#allocation3], 1

</llo_original>
